<compile_context>
chip_gen: v5e
topology: v5e:2x2
jax: 0.10.0
libtpu: 0.0.40
codegen_flags: <defaults>
</compile_context>

<pallas_src>
import jax
import jax.numpy as jnp
from jax.experimental import pallas as pl
from jax.experimental.pallas import tpu as pltpu


def _round_up(x, m):
    return ((x + m - 1) // m) * m


def _fse_kernel(ids_ref, tbl_ref, flag_ref, wT_ref, b_ref, out_ref):
    """One batch tile of the FSE encoder.

    ids_ref : [TB, N]   int32  token ids (padding token -> all-zero table row)
    tbl_ref : [V, Ep]   f32    word embedding table, embed dim zero-padded to Ep
    flag_ref: [1, V]    f32    1.0 where a table row has any nonzero element
    wT_ref  : [Ep, Ep]  f32    word_proj.weight^T, zero-padded
    b_ref   : [1, Ep]   f32    word_proj.bias, zero-padded
    out_ref : [TB, Ep]  f32
    """
    ids = ids_ref[...]                                             # [TB, N]
    TB, N = ids.shape
    V = tbl_ref.shape[0]

    # One-hot word-count histogram per row: counts[b, v] = #{n : ids[b, n] == v}.
    # Built from lane-broadcast compares (no data-dependent gather in the kernel;
    # also makes ragged / padded batch rows harmless).
    vocab_iota = jax.lax.broadcasted_iota(jnp.int32, (TB, V), 1)   # [TB, V]
    counts = jnp.zeros((TB, V), jnp.float32)
    for n in range(N):                                             # N is small & static
        counts = counts + (ids[:, n:n + 1] == vocab_iota).astype(jnp.float32)

    # sum_n table[ids[b, n]]  ==  counts @ table      (MXU)
    summed = jnp.dot(counts, tbl_ref[...],
                     preferred_element_type=jnp.float32)           # [TB, Ep]

    # torch.count_nonzero(count_nonzero(emb, -1), -1): number of word positions whose
    # embedding row is not all-zero  ==  counts . row_nonzero_flag
    valid = jnp.sum(counts * flag_ref[...], axis=-1, keepdims=True)  # [TB, 1]

    mean = summed * pl.reciprocal(valid + 1e-6, approx=True)         # [TB, Ep]

    proj = jnp.dot(mean, wT_ref[...],
                   preferred_element_type=jnp.float32) + b_ref[...]  # [TB, Ep]
    out_ref[...] = jnp.tanh(proj)


def fse_pallas(words, tbl_pad, row_flag, wT_pad, b_pad, padding_idx, *, max_tile=256):
    """words: [B, N] int32. Returns [B, Ep] f32 (caller slices real embed columns)."""
    B, N = words.shape
    V, Ep = tbl_pad.shape

    # Batch tiling: TB is a multiple of 8; pad B so the grid is dense (padded rows use
    # padding_idx -> zero table row -> discarded by the final slice).
    TB = min(max_tile, _round_up(B, 8))
    Bp = _round_up(B, TB)
    if Bp != B:
        words = jnp.pad(words, ((0, Bp - B), (0, 0)), constant_values=padding_idx)
    words = words.astype(jnp.int32)

    out = pl.pallas_call(
        _fse_kernel,
        out_shape=jax.ShapeDtypeStruct((Bp, Ep), jnp.float32),
        grid=(Bp // TB,),
        in_specs=[
            pl.BlockSpec((TB, N), lambda i: (i, 0)),    # token ids: tiled over batch
            pl.BlockSpec((V, Ep), lambda i: (0, 0)),    # embedding table: resident
            pl.BlockSpec((1, V), lambda i: (0, 0)),     # row-nonzero flags: resident
            pl.BlockSpec((Ep, Ep), lambda i: (0, 0)),   # W^T: resident
            pl.BlockSpec((1, Ep), lambda i: (0, 0)),    # bias: resident
        ],
        out_specs=pl.BlockSpec((TB, Ep), lambda i: (i, 0)),
        compiler_params=pltpu.CompilerParams(
            dimension_semantics=("parallel",)),
    )(words, tbl_pad, row_flag, wT_pad, b_pad)
    return out[:B]


class PallasLSEModel:
    def __init__(self, word_num, item_num, embedding_size, key):
        k1, k2, k3, k4 = jax.random.split(key, 4)
        self.word_num = word_num
        self.embedding_size = embedding_size
        E = embedding_size
        Ep = _round_up(max(E, 128), 128)    # lane-dense / MXU-aligned embed dim
        self.Ep = Ep
        V = word_num + 1

        # nn.Embedding(word_num + 1, E, padding_idx=word_num): padding row is zero
        tbl = jax.random.normal(k1, (V, E), jnp.float32) * 0.1
        tbl = tbl.at[word_num].set(0.0)
        self.word_embed = tbl                                   # unpadded (reference)
        self.word_embed_pad = jnp.zeros((V, Ep), jnp.float32).at[:, :E].set(tbl)
        # 1.0 for rows with any nonzero element (matches torch count_nonzero semantics)
        self.row_flag = jnp.any(tbl != 0.0, axis=-1).astype(jnp.float32).reshape(1, V)

        # nn.Linear(E, E) -- transpose / pad hoisted here (done once)
        w = jax.random.normal(k2, (E, E), jnp.float32) * 0.1
        b = jax.random.normal(k3, (E,), jnp.float32) * 0.1
        self.word_proj_w = w
        self.word_proj_b = b
        self.wT_pad = jnp.zeros((Ep, Ep), jnp.float32).at[:E, :E].set(w.T)
        self.b_pad = jnp.zeros((1, Ep), jnp.float32).at[0, :E].set(b)

        # nn.Embedding(item_num, E)
        self.item_embed = jax.random.normal(k4, (item_num, E), jnp.float32) * 0.1

    def fse_func(self, words):
        out = fse_pallas(words, self.word_embed_pad, self.row_flag,
                         self.wT_pad, self.b_pad, self.word_num)
        return out[:, :self.embedding_size]

    def forward(self, items, query_words, mode, review_words=None, neg_items=None):
        if mode == 'output_embedding':
            return jnp.take(self.item_embed, items, axis=0)
        if mode == 'test':
            return self.fse_func(query_words)
        if mode == 'train':
            # TODO(synk): `nce_loss` is not defined in the reference module; train mode untranslated.
            raise NotImplementedError("nce_loss is not defined in the reference module")


def _fse_ref(word_embed, w, b, words):
    """Pure-JAX transliteration of the PyTorch fse_func (the spec)."""
    emb = jnp.take(word_embed, words, axis=0)
    per_word_nnz = jnp.sum((emb != 0).astype(jnp.int32), axis=-1)
    valid = jnp.sum((per_word_nnz != 0).astype(jnp.float32), axis=-1, keepdims=True)
    mean = jnp.sum(emb, axis=1) / (valid + 1e-6)
    return jnp.tanh(mean @ w.T + b)


if __name__ == "__main__":
    key = jax.random.PRNGKey(0)
    word_num, item_num, embed = 50, 20, 32
    batch, n_query = 2, 8

    model = PallasLSEModel(word_num, item_num, embed, key)

    kq, ki = jax.random.split(jax.random.PRNGKey(1))
    query_words = jax.random.randint(kq, (batch, n_query), 0, word_num, dtype=jnp.int32)
    # inject padding tokens (index == word_num) so valid_len differs per row
    query_words = query_words.at[0, 5:].set(word_num)
    query_words = query_words.at[1, 7:].set(word_num)
    items = jax.random.randint(ki, (batch,), 0, item_num, dtype=jnp.int32)

    # 'test' mode: query encoding through the Pallas kernel
    q_emb = jax.block_until_ready(model.forward(items, query_words, mode='test'))

    # 'output_embedding' mode
    it_emb = jax.block_until_ready(model.forward(items, query_words, mode='output_embedding'))

    # correctness check vs pure-JAX reference (approx reciprocal -> modest tolerance)
    ref = _fse_ref(model.word_embed, model.word_proj_w, model.word_proj_b, query_words)
    assert q_emb.shape == (batch, embed)
    assert it_emb.shape == (batch, embed)
    assert jnp.allclose(q_emb, ref, atol=1e-3, rtol=1e-3), "mismatch vs reference"

    print("KERNEL_OK")
</pallas_src>

<mosaic_0001>
module attributes {stable_mosaic.version = 11 : i64} {
  func.func @_fse_kernel(%arg0: i32, %arg1: memref<8x8xi32, #tpu.memory_space<vmem>>, %arg2: memref<51x128xf32, #tpu.memory_space<vmem>>, %arg3: memref<1x51xf32, #tpu.memory_space<vmem>>, %arg4: memref<128x128xf32, #tpu.memory_space<vmem>>, %arg5: memref<1x128xf32, #tpu.memory_space<vmem>>, %arg6: memref<8x128xf32, #tpu.memory_space<vmem>>) attributes {dimension_semantics = [#tpu.dimension_semantics<parallel>], iteration_bounds = array<i64: 1>, scalar_prefetch = 0 : i64, scratch_operands = 0 : i64, tpu.core_type = #tpu.core_type<tc>, window_params = [{transform_indices = @transform_0, window_bounds = array<i64: 8, 8>}, {pipeline_mode = #tpu.pipeline_mode<synchronous>, transform_indices = @transform_1, window_bounds = array<i64: 51, 128>}, {pipeline_mode = #tpu.pipeline_mode<synchronous>, transform_indices = @transform_2, window_bounds = array<i64: 1, 51>}, {pipeline_mode = #tpu.pipeline_mode<synchronous>, transform_indices = @transform_3, window_bounds = array<i64: 128, 128>}, {pipeline_mode = #tpu.pipeline_mode<synchronous>, transform_indices = @transform_4, window_bounds = array<i64: 1, 128>}, {transform_indices = @transform_5, window_bounds = array<i64: 8, 128>}]} {
    %c0 = arith.constant 0 : index
    %c0_0 = arith.constant 0 : index
    %0 = vector.load %arg1[%c0, %c0_0] : memref<8x8xi32, #tpu.memory_space<vmem>>, vector<8x8xi32>
    %1 = tpu.iota {dimensions = array<i32: 1>} : vector<8x51xi32>
    %cst = arith.constant 0.000000e+00 : f32
    %2 = vector.broadcast %cst : f32 to vector<8x51xf32>
    %3 = vector.extract_strided_slice %0 {offsets = [0, 0], sizes = [8, 1], strides = [1, 1]} : vector<8x8xi32> to vector<8x1xi32>
    %4 = vector.broadcast %3 : vector<8x1xi32> to vector<8x51xi32>
    %5 = arith.cmpi eq, %4, %1 : vector<8x51xi32>
    %6 = arith.extui %5 : vector<8x51xi1> to vector<8x51xi32>
    %7 = arith.sitofp %6 : vector<8x51xi32> to vector<8x51xf32>
    %8 = arith.addf %2, %7 : vector<8x51xf32>
    %9 = vector.extract_strided_slice %0 {offsets = [0, 1], sizes = [8, 1], strides = [1, 1]} : vector<8x8xi32> to vector<8x1xi32>
    %10 = vector.broadcast %9 : vector<8x1xi32> to vector<8x51xi32>
    %11 = arith.cmpi eq, %10, %1 : vector<8x51xi32>
    %12 = arith.extui %11 : vector<8x51xi1> to vector<8x51xi32>
    %13 = arith.sitofp %12 : vector<8x51xi32> to vector<8x51xf32>
    %14 = arith.addf %8, %13 : vector<8x51xf32>
    %15 = vector.extract_strided_slice %0 {offsets = [0, 2], sizes = [8, 1], strides = [1, 1]} : vector<8x8xi32> to vector<8x1xi32>
    %16 = vector.broadcast %15 : vector<8x1xi32> to vector<8x51xi32>
    %17 = arith.cmpi eq, %16, %1 : vector<8x51xi32>
    %18 = arith.extui %17 : vector<8x51xi1> to vector<8x51xi32>
    %19 = arith.sitofp %18 : vector<8x51xi32> to vector<8x51xf32>
    %20 = arith.addf %14, %19 : vector<8x51xf32>
    %21 = vector.extract_strided_slice %0 {offsets = [0, 3], sizes = [8, 1], strides = [1, 1]} : vector<8x8xi32> to vector<8x1xi32>
    %22 = vector.broadcast %21 : vector<8x1xi32> to vector<8x51xi32>
    %23 = arith.cmpi eq, %22, %1 : vector<8x51xi32>
    %24 = arith.extui %23 : vector<8x51xi1> to vector<8x51xi32>
    %25 = arith.sitofp %24 : vector<8x51xi32> to vector<8x51xf32>
    %26 = arith.addf %20, %25 : vector<8x51xf32>
    %27 = vector.extract_strided_slice %0 {offsets = [0, 4], sizes = [8, 1], strides = [1, 1]} : vector<8x8xi32> to vector<8x1xi32>
    %28 = vector.broadcast %27 : vector<8x1xi32> to vector<8x51xi32>
    %29 = arith.cmpi eq, %28, %1 : vector<8x51xi32>
    %30 = arith.extui %29 : vector<8x51xi1> to vector<8x51xi32>
    %31 = arith.sitofp %30 : vector<8x51xi32> to vector<8x51xf32>
    %32 = arith.addf %26, %31 : vector<8x51xf32>
    %33 = vector.extract_strided_slice %0 {offsets = [0, 5], sizes = [8, 1], strides = [1, 1]} : vector<8x8xi32> to vector<8x1xi32>
    %34 = vector.broadcast %33 : vector<8x1xi32> to vector<8x51xi32>
    %35 = arith.cmpi eq, %34, %1 : vector<8x51xi32>
    %36 = arith.extui %35 : vector<8x51xi1> to vector<8x51xi32>
    %37 = arith.sitofp %36 : vector<8x51xi32> to vector<8x51xf32>
    %38 = arith.addf %32, %37 : vector<8x51xf32>
    %39 = vector.extract_strided_slice %0 {offsets = [0, 6], sizes = [8, 1], strides = [1, 1]} : vector<8x8xi32> to vector<8x1xi32>
    %40 = vector.broadcast %39 : vector<8x1xi32> to vector<8x51xi32>
    %41 = arith.cmpi eq, %40, %1 : vector<8x51xi32>
    %42 = arith.extui %41 : vector<8x51xi1> to vector<8x51xi32>
    %43 = arith.sitofp %42 : vector<8x51xi32> to vector<8x51xf32>
    %44 = arith.addf %38, %43 : vector<8x51xf32>
    %45 = vector.extract_strided_slice %0 {offsets = [0, 7], sizes = [8, 1], strides = [1, 1]} : vector<8x8xi32> to vector<8x1xi32>
    %46 = vector.broadcast %45 : vector<8x1xi32> to vector<8x51xi32>
    %47 = arith.cmpi eq, %46, %1 : vector<8x51xi32>
    %48 = arith.extui %47 : vector<8x51xi1> to vector<8x51xi32>
    %49 = arith.sitofp %48 : vector<8x51xi32> to vector<8x51xf32>
    %50 = arith.addf %44, %49 : vector<8x51xf32>
    %c0_1 = arith.constant 0 : index
    %c0_2 = arith.constant 0 : index
    %51 = vector.load %arg2[%c0_1, %c0_2] : memref<51x128xf32, #tpu.memory_space<vmem>>, vector<51x128xf32>
    %cst_3 = arith.constant dense<0.000000e+00> : vector<8x128xf32>
    %52 = tpu.matmul %50, %51, %cst_3 {dimension_numbers = #tpu.dot_dimension_numbers<[1], [0], [0], [1], [0, 0, 1, 1], [], []>} : vector<8x51xf32>, vector<51x128xf32>, vector<8x128xf32> -> vector<8x128xf32>
    %c0_4 = arith.constant 0 : index
    %c0_5 = arith.constant 0 : index
    %53 = vector.load %arg3[%c0_4, %c0_5] : memref<1x51xf32, #tpu.memory_space<vmem>>, vector<1x51xf32>
    %54 = vector.broadcast %53 : vector<1x51xf32> to vector<8x51xf32>
    %55 = arith.mulf %50, %54 : vector<8x51xf32>
    %cst_6 = arith.constant dense<0.000000e+00> : vector<8xf32>
    %56 = vector.multi_reduction <add>, %55, %cst_6 [1] : vector<8x51xf32> to vector<8xf32>
    %57 = vector.shape_cast %56 : vector<8xf32> to vector<8x1xf32>
    %cst_7 = arith.constant 9.99999997E-7 : f32
    %58 = vector.broadcast %cst_7 : f32 to vector<8x1xf32>
    %59 = arith.addf %57, %58 : vector<8x1xf32>
    %60 = tpu.reciprocal %59 {approx = true} : vector<8x1xf32> -> vector<8x1xf32>
    %61 = vector.broadcast %60 : vector<8x1xf32> to vector<8x128xf32>
    %62 = arith.mulf %52, %61 : vector<8x128xf32>
    %c0_8 = arith.constant 0 : index
    %c0_9 = arith.constant 0 : index
    %63 = vector.load %arg4[%c0_8, %c0_9] : memref<128x128xf32, #tpu.memory_space<vmem>>, vector<128x128xf32>
    %cst_10 = arith.constant dense<0.000000e+00> : vector<8x128xf32>
    %64 = tpu.matmul %62, %63, %cst_10 {dimension_numbers = #tpu.dot_dimension_numbers<[1], [0], [0], [1], [0, 0, 1, 1], [], []>} : vector<8x128xf32>, vector<128x128xf32>, vector<8x128xf32> -> vector<8x128xf32>
    %c0_11 = arith.constant 0 : index
    %c0_12 = arith.constant 0 : index
    %65 = vector.load %arg5[%c0_11, %c0_12] : memref<1x128xf32, #tpu.memory_space<vmem>>, vector<1x128xf32>
    %66 = vector.broadcast %65 : vector<1x128xf32> to vector<8x128xf32>
    %67 = arith.addf %64, %66 : vector<8x128xf32>
    %68 = math.tanh %67 : vector<8x128xf32>
    %c0_13 = arith.constant 0 : index
    %c0_14 = arith.constant 0 : index
    %69 = vector.load %arg6[%c0_13, %c0_14] : memref<8x128xf32, #tpu.memory_space<vmem>>, vector<8x128xf32>
    tpu.vector_store %arg6[%c0_13, %c0_14], %68 {strides = array<i32>} : memref<8x128xf32, #tpu.memory_space<vmem>>, vector<8x128xf32>,
    return
  }
  func.func @transform_0(%arg0: i32) -> (i32, i32) {
    %c0_i32 = arith.constant 0 : i32
    %c0_i32_0 = arith.constant 0 : i32
    return %arg0, %c0_i32 : i32, i32
  }
  func.func @transform_1(%arg0: i32) -> (i32, i32) {
    %c0_i32 = arith.constant 0 : i32
    %c0_i32_0 = arith.constant 0 : i32
    %c0_i32_1 = arith.constant 0 : i32
    return %c0_i32, %c0_i32_0 : i32, i32
  }
  func.func @transform_2(%arg0: i32) -> (i32, i32) {
    %c0_i32 = arith.constant 0 : i32
    %c0_i32_0 = arith.constant 0 : i32
    %c0_i32_1 = arith.constant 0 : i32
    return %c0_i32, %c0_i32_0 : i32, i32
  }
  func.func @transform_3(%arg0: i32) -> (i32, i32) {
    %c0_i32 = arith.constant 0 : i32
    %c0_i32_0 = arith.constant 0 : i32
    %c0_i32_1 = arith.constant 0 : i32
    return %c0_i32, %c0_i32_0 : i32, i32
  }
  func.func @transform_4(%arg0: i32) -> (i32, i32) {
    %c0_i32 = arith.constant 0 : i32
    %c0_i32_0 = arith.constant 0 : i32
    %c0_i32_1 = arith.constant 0 : i32
    return %c0_i32, %c0_i32_0 : i32, i32
  }
  func.func @transform_5(%arg0: i32) -> (i32, i32) {
    %c0_i32 = arith.constant 0 : i32
    %c0_i32_0 = arith.constant 0 : i32
    return %arg0, %c0_i32 : i32, i32
  }
}

</mosaic_0001>

<llo_original>
// kernel: tpu_custom_call.1
$region0: #{tpu_custom_call.1}
  #allocation0 [shape = 'u32[]', space=smem, size = 0x4, offset = 0x4, fixed_abs, tag = 'smem constant byte address 0x4 - core index']
  #allocation1 [shape = 'u32[72,128]{1,0:T(1,128)}', space=vmem, size = 0x9000, scoped, tag = 'internal scratch']
  %s0 = inlined_call_operand.hbm [shape: s32[8,8], index: 0, kind: input, shape index: {}]
  %s1 = inlined_call_operand.hbm [shape: f32[51,128], index: 1, kind: input, shape index: {}]
  %s2 = inlined_call_operand.vmem [shape: f32[1,51], index: 2, kind: input, shape index: {}]
  %s3 = inlined_call_operand.hbm [shape: f32[128,128], index: 3, kind: input, shape index: {}]
  %s4 = inlined_call_operand.vmem [shape: f32[1,128], index: 4, kind: input, shape index: {}]
  %s5 = inlined_call_operand.hbm [shape: f32[8,128], index: 5, kind: output, shape index: {}]
  %s6 = sld [smem:[#allocation0]]
  $region42: #{tpu_custom_call.1} parent=0
    _
  %s8 = ssub.s32 1, %s6
  %s9 = scalar_select 0, %s8, %s6
  $region1: #{tpu_custom_call.1} parent=0
    #allocation2 [shape = 'u8[4096]{0}', space=vmem, size = 0x1000, scoped, tag = 'input window, operand 0, single buffered']
    #allocation3 [shape = 's32[1]{0}', space=sflag, size = 0x4, scoped, tag = 'scoped memory for tpu_custom_call.1']
    #allocation4 [shape = 's32[1]{0}', space=sflag, size = 0x4, scoped, tag = 'scoped memory for tpu_custom_call.1']
    #allocation5 [shape = 'u8[28672]{0}', space=vmem, size = 0x7000, scoped, tag = 'input window, operand 1, single buffered']
    #allocation6 [shape = 's32[1]{0}', space=sflag, size = 0x4, scoped, tag = 'scoped memory for tpu_custom_call.1']
    #allocation7 [shape = 'u8[65536]{0}', space=vmem, size = 0x10000, scoped, tag = 'input window, operand 3, single buffered']
    #allocation8 [shape = 'u8[4096]{0}', space=vmem, size = 0x1000, scoped, tag = 'output window, operand 0, single buffered']
    %10 = vsyncpa [#allocation3], 0
    %11 = vsyncpa [#allocation6], 0
    %12 = vsyncpa [#allocation4], 0
    // Predicated region
    $region2: #{tpu_custom_call.1} parent=1 // pred_check
      _
    $region3: #{tpu_custom_call.1} parent=1 // pred_check_branch
      %14 = sbr.rel (0) target = $region5
    $region4: #{tpu_custom_call.1} parent=1 // pred_region
      %16 = vsyncadd [#allocation3], 0
      %s18 = sshll.u32 %s0, 4
      %s19 = int_to_ptr.hbm [resolvable:$true] %s18
      %s20 = sshll.u32 [#allocation2], 4
      %s21 = int_to_ptr.vmem [resolvable:$true] %s20
      %23 = dma.hbm_to_vmem [thread:$0]  %s19, 128, %s21, [#allocation3]
    $region5: #{tpu_custom_call.1} parent=1 // pred_fallthru
      _
    // Predicated region
    $region6: #{tpu_custom_call.1} parent=1 // pred_check
      _
    $region7: #{tpu_custom_call.1} parent=1 // pred_check_branch
      %25 = sbr.rel (0) target = $region9
    $region8: #{tpu_custom_call.1} parent=1 // pred_region
      %27 = vsyncadd [#allocation6], 0
      %s28 = sshll.u32 %s1, 4
      %s29 = int_to_ptr.hbm [resolvable:$true] %s28
      %s30 = sshll.u32 [#allocation5], 4
      %s31 = int_to_ptr.vmem [resolvable:$true] %s30
      %36 = dma.hbm_to_vmem [thread:$0]  %s29, 896, %s31, [#allocation6], 128, 128, 8
    $region9: #{tpu_custom_call.1} parent=1 // pred_fallthru
      _
    // Predicated region
    $region10: #{tpu_custom_call.1} parent=1 // pred_check
      _
    $region11: #{tpu_custom_call.1} parent=1 // pred_check_branch
      %38 = sbr.rel (0) target = $region13
    $region12: #{tpu_custom_call.1} parent=1 // pred_region
      _
    $region13: #{tpu_custom_call.1} parent=1 // pred_fallthru
      _
    // Predicated region
    $region14: #{tpu_custom_call.1} parent=1 // pred_check
      _
    $region15: #{tpu_custom_call.1} parent=1 // pred_check_branch
      %40 = sbr.rel (0) target = $region17
    $region16: #{tpu_custom_call.1} parent=1 // pred_region
      %42 = vsyncadd [#allocation6], 0
      %s43 = sshll.u32 %s3, 4
      %s44 = int_to_ptr.hbm [resolvable:$true] %s43
      %s45 = sshll.u32 [#allocation7], 4
      %s46 = int_to_ptr.vmem [resolvable:$true] %s45
      %51 = dma.hbm_to_vmem [thread:$0]  %s44, 2048, %s46, [#allocation6], 128, 128, 8
    $region17: #{tpu_custom_call.1} parent=1 // pred_fallthru
      _
    // Predicated region
    $region18: #{tpu_custom_call.1} parent=1 // pred_check
      _
    $region19: #{tpu_custom_call.1} parent=1 // pred_check_branch
      %53 = sbr.rel (0) target = $region21
    $region20: #{tpu_custom_call.1} parent=1 // pred_region
      _
    $region21: #{tpu_custom_call.1} parent=1 // pred_fallthru
      _
    // Predicated region
    $region22: #{tpu_custom_call.1} parent=1 // pred_check
      _
    $region23: #{tpu_custom_call.1} parent=1 // pred_check_branch
      %55 = sbr.rel (0) target = $region25
    $region24: #{tpu_custom_call.1} parent=1 // pred_region
      %57 = dma.done [#allocation3], 128
    $region25: #{tpu_custom_call.1} parent=1 // pred_fallthru
      _
    // Predicated region
    $region26: #{tpu_custom_call.1} parent=1 // pred_check
      _
    $region27: #{tpu_custom_call.1} parent=1 // pred_check_branch
      %59 = sbr.rel (0) target = $region29
    $region28: #{tpu_custom_call.1} parent=1 // pred_region
      %61 = dma.done [#allocation6], 896
    $region29: #{tpu_custom_call.1} parent=1 // pred_fallthru
      _
    // Predicated region
    $region30: #{tpu_custom_call.1} parent=1 // pred_check
      _
    $region31: #{tpu_custom_call.1} parent=1 // pred_check_branch
      %63 = sbr.rel (0) target = $region33
    $region32: #{tpu_custom_call.1} parent=1 // pred_region
      %65 = dma.done [#allocation6], 2048
    $region33: #{tpu_custom_call.1} parent=1 // pred_fallthru
      _
    %v66 = vld [vmem:[#allocation2] sm:$0xff]
    %v67 = vlaneseq
    %v68 = vand.u32 %v67, 127
    %69 = vset.pattern.permute.xlu0 0
    %70 = vperm.xlu0 %69, %v66
    %v71 = vpop.permute.xlu0 %70
    %vm72 = vcmp.eq.s32.totalorder %v71, %v68
    %v73 = vsel %vm72, 1, 0
    %v74 = vcvt.s32.f32 %v73
    %v75 = vadd.f32 %v74, 0.0
    %76 = vset.pattern.permute.xlu0 1
    %77 = vperm.xlu0 %76, %v66
    %v78 = vpop.permute.xlu0 %77
    %vm79 = vcmp.eq.s32.totalorder %v78, %v68
    %v80 = vsel %vm79, 1, 0
    %v81 = vcvt.s32.f32 %v80
    %v82 = vadd.f32 %v75, %v81
    %83 = vset.pattern.permute.xlu0 2
    %84 = vperm.xlu0 %83, %v66
    %v85 = vpop.permute.xlu0 %84
    %vm86 = vcmp.eq.s32.totalorder %v85, %v68
    %v87 = vsel %vm86, 1, 0
    %v88 = vcvt.s32.f32 %v87
    %v89 = vadd.f32 %v82, %v88
    %90 = vset.pattern.permute.xlu0 3
    %91 = vperm.xlu0 %90, %v66
    %v92 = vpop.permute.xlu0 %91
    %vm93 = vcmp.eq.s32.totalorder %v92, %v68
    %v94 = vsel %vm93, 1, 0
    %v95 = vcvt.s32.f32 %v94
    %v96 = vadd.f32 %v89, %v95
    %97 = vset.pattern.permute.xlu0 4
    %98 = vperm.xlu0 %97, %v66
    %v99 = vpop.permute.xlu0 %98
    %vm100 = vcmp.eq.s32.totalorder %v99, %v68
    %v101 = vsel %vm100, 1, 0
    %v102 = vcvt.s32.f32 %v101
    %v103 = vadd.f32 %v96, %v102
    %104 = vset.pattern.permute.xlu0 5
    %105 = vperm.xlu0 %104, %v66
    %v106 = vpop.permute.xlu0 %105
    %vm107 = vcmp.eq.s32.totalorder %v106, %v68
    %v108 = vsel %vm107, 1, 0
    %v109 = vcvt.s32.f32 %v108
    %v110 = vadd.f32 %v103, %v109
    %111 = vset.pattern.permute.xlu0 6
    %112 = vperm.xlu0 %111, %v66
    %v113 = vpop.permute.xlu0 %112
    %vm114 = vcmp.eq.s32.totalorder %v113, %v68
    %v115 = vsel %vm114, 1, 0
    %v116 = vcvt.s32.f32 %v115
    %v117 = vadd.f32 %v110, %v116
    %118 = vset.pattern.permute.xlu0 7
    %119 = vperm.xlu0 %118, %v66
    %v120 = vpop.permute.xlu0 %119
    %vm121 = vcmp.eq.s32.totalorder %v120, %v68
    %v122 = vsel %vm121, 1, 0
    %v123 = vcvt.s32.f32 %v122
    %v124 = vadd.f32 %v117, %v123
    %v125 = vld [vmem:[#allocation5] sm:$0xff]
    %v126 = vld [vmem:[#allocation5 + $0x8] sm:$0xff]
    %v127 = vld [vmem:[#allocation5 + $0x10] sm:$0xff]
    %v128 = vld [vmem:[#allocation5 + $0x18] sm:$0xff]
    %v129 = vld [vmem:[#allocation5 + $0x20] sm:$0xff]
    %v130 = vld [vmem:[#allocation5 + $0x28] sm:$0xff]
    %v131 = vld [vmem:[#allocation5 + $0x30] sm:$0x7]
    %vm132 = vcmask 416768
    %v134 = vsel %vm132, %v124, 0
    %vm136 = vcmask 1042432
    %v138 = vsel %vm136, %v131, 0
    %140 = vmatpush.msra.mxu0 0.0
    %141 = vmatpush.msra.mxu0 0.0
    %142 = vmatpush.msra.mxu0 0.0
    %143 = vmatpush.msra.mxu0 0.0
    %144 = vmatpush.msra.mxu0 0.0
    %145 = vmatpush.msra.mxu0 0.0
    %146 = vmatpush.msra.mxu0 0.0
    %147 = vmatpush.msra.mxu0 0.0
    %148 = vmatpush.msra.mxu0 0.0
    %149 = vmatpush.msra.mxu0 %v138
    %150 = vmatpush.msra.mxu0 %v130
    %151 = vmatpush.msra.mxu0 %v129
    %152 = vmatpush.msra.mxu0 %v128
    %153 = vmatpush.msra.mxu0 %v127
    %154 = vmatpush.msra.mxu0 %v126
    %155 = vmatpush.msra.mxu0 %v125
    %156 = vmatmul.f32.gmra.mxu0 %v134
    %v157 = vpop.f32.mrf.mxu0
    %v158 = vadd.f32 0.0, %v157
    %159 = vdwg.mxu0
    %v160 = vld [vmem:[%s2] sm:$0x1]
    %v162 = vperm.slane %v160, 0
    %v164 = vmul.f32 %v124, %v162
    %v165 = vsel %vm132, %v164, 0.0
    %166 = vadd.xlane.f32.xlu0 %v165
    %v167 = vpop.xlane.xlu0 %166
    %v168 = vadd.f32 %v167, 1e-06
    %v169 = vrcp.pop %v168
    %v170 = vmul.f32 %v158, %v169
    %v171 = vld [vmem:[#allocation7] sm:$0xff]
    %v172 = vld [vmem:[#allocation7 + $0x8] sm:$0xff]
    %v173 = vld [vmem:[#allocation7 + $0x10] sm:$0xff]
    %v174 = vld [vmem:[#allocation7 + $0x18] sm:$0xff]
    %v175 = vld [vmem:[#allocation7 + $0x20] sm:$0xff]
    %v176 = vld [vmem:[#allocation7 + $0x28] sm:$0xff]
    %v177 = vld [vmem:[#allocation7 + $0x30] sm:$0xff]
    %v178 = vld [vmem:[#allocation7 + $0x38] sm:$0xff]
    %v179 = vld [vmem:[#allocation7 + $0x40] sm:$0xff]
    %v180 = vld [vmem:[#allocation7 + $0x48] sm:$0xff]
    %v181 = vld [vmem:[#allocation7 + $0x50] sm:$0xff]
    %v182 = vld [vmem:[#allocation7 + $0x58] sm:$0xff]
    %v183 = vld [vmem:[#allocation7 + $0x60] sm:$0xff]
    %v184 = vld [vmem:[#allocation7 + $0x68] sm:$0xff]
    %v185 = vld [vmem:[#allocation7 + $0x70] sm:$0xff]
    %v186 = vld [vmem:[#allocation7 + $0x78] sm:$0xff]
    %v187 = vld [vmem:[%s4] sm:$0x1]
    %v189 = vperm.slane %v187, 0
    %191 = vmatpush.msra.mxu0 %v186
    %192 = vmatpush.msra.mxu0 %v185
    %193 = vmatpush.msra.mxu0 %v184
    %194 = vmatpush.msra.mxu0 %v183
    %195 = vmatpush.msra.mxu0 %v182
    %196 = vmatpush.msra.mxu0 %v181
    %197 = vmatpush.msra.mxu0 %v180
    %198 = vmatpush.msra.mxu0 %v179
    %199 = vmatpush.msra.mxu0 %v178
    %200 = vmatpush.msra.mxu0 %v177
    %201 = vmatpush.msra.mxu0 %v176
    %202 = vmatpush.msra.mxu0 %v175
    %203 = vmatpush.msra.mxu0 %v174
    %204 = vmatpush.msra.mxu0 %v173
    %205 = vmatpush.msra.mxu0 %v172
    %206 = vmatpush.msra.mxu0 %v171
    %207 = vmatmul.f32.gmra.mxu0 %v170
    %v208 = vpop.f32.mrf.mxu0
    %v209 = vadd.f32 %v189, %v208
    %210 = vdwg.mxu0
    %v211 = vtanh.pop %v209
    %212 = vst [vmem:[#allocation8] sm:$0xff] %v211
    // Predicated region
    $region34: #{tpu_custom_call.1} parent=1 // pred_check
      _
    $region35: #{tpu_custom_call.1} parent=1 // pred_check_branch
      %214 = sbr.rel (0) target = $region37
    $region36: #{tpu_custom_call.1} parent=1 // pred_region
      %216 = vsyncadd [#allocation4], 0
      %s218 = sshll.u32 [#allocation8], 4
      %s219 = int_to_ptr.vmem [resolvable:$true] %s218
      %s220 = sshll.u32 %s5, 4
      %s221 = int_to_ptr.hbm [resolvable:$true] %s220
      %223 = dma.vmem_to_hbm [thread:$0]  %s219, 128, %s221, [#allocation4]
    $region37: #{tpu_custom_call.1} parent=1 // pred_fallthru
      _
    // Predicated region
    $region38: #{tpu_custom_call.1} parent=1 // pred_check
      _
    $region39: #{tpu_custom_call.1} parent=1 // pred_check_branch
      %225 = sbr.rel (0) target = $region41
    $region40: #{tpu_custom_call.1} parent=1 // pred_region
      %227 = dma.done [#allocation4], 128
    $region41: #{tpu_custom_call.1} parent=1 // pred_fallthru
      _
    %228 = vsyncpa [#allocation3], 1
    %229 = vsyncpa [#allocation6], 1
    %230 = vsyncpa [#allocation4], 1

</llo_original>
